<compile_context>
chip_gen: v7x
topology: tpu7x:2x2x1
jax: 0.10.0
libtpu: 0.0.40
codegen_flags: <defaults>
</compile_context>

<pallas_src>
import jax
import jax.numpy as jnp
from jax.experimental import pallas as pl
from jax.experimental.pallas import tpu as pltpu

IN_DIM, H1_DIM, H2_DIM, OUT_DIM = 28 * 28, 56, 16, 10
OUT_PAD = 128  # lane-dense padded output width


def _round_up(x, m):
    return ((x + m - 1) // m) * m


def mlp_kernel(x_ref, w1_ref, b1_ref, w2_ref, b2_ref, w3_ref, b3_ref, o_ref):
    # x: [TB, 784] bf16 batch tile; weights bf16; biases f32.
    x = x_ref[...]

    # fc1 + ReLU : [TB, 784] @ [784, 56] -> f32 [TB, 56]
    h1 = jnp.dot(x, w1_ref[...], preferred_element_type=jnp.float32) + b1_ref[...]
    h1 = jnp.maximum(h1, 0.0)

    # fc2 + ReLU : [TB, 56] @ [56, 16] -> f32 [TB, 16]  (bf16 operands only)
    h2 = jnp.dot(h1.astype(jnp.bfloat16), w2_ref[...],
                 preferred_element_type=jnp.float32) + b2_ref[...]
    h2 = jnp.maximum(h2, 0.0)

    # fc3 : [TB, 16] @ [16, 128] -> f32 [TB, 128]
    # (columns 10..127 have zero weights and -1e30 bias -> prob exactly 0)
    logits = jnp.dot(h2.astype(jnp.bfloat16), w3_ref[...],
                     preferred_element_type=jnp.float32) + b3_ref[...]

    # Numerically stable softmax over dim=1. Exact division so rows sum to 1.
    m = jnp.max(logits, axis=1, keepdims=True)
    e = jnp.exp(logits - m)
    denom = jnp.sum(e, axis=1, keepdims=True)
    o_ref[...] = (e / denom).astype(o_ref.dtype)


def custom_mlp_forward(img, params, *, block_b=1024):
    """img: [B, 1, 28, 28] float32. Returns softmax probs [B, 10]."""
    w1, b1, w2, b2, w3, b3 = params
    B = img.shape[0]

    # Flatten + bf16 cast of the streamed operand (halves input HBM bytes).
    # TODO(synk): in a larger pipeline, fuse/hoist this cast (or keep inputs bf16)
    # so the wrapper cast doesn't re-read the f32 array.
    x = img.reshape(B, IN_DIM).astype(jnp.bfloat16)

    # Matmul operands -> bf16 once; biases stay f32 (added post-accumulation).
    w1b = w1.astype(jnp.bfloat16)
    w2b = w2.astype(jnp.bfloat16)
    w3p = (jnp.zeros((H2_DIM, OUT_PAD), jnp.float32)
           .at[:, :OUT_DIM].set(w3).astype(jnp.bfloat16))
    b3p = jnp.full((1, OUT_PAD), -1e30, jnp.float32).at[:, :OUT_DIM].set(b3)
    b1f = b1.astype(jnp.float32)
    b2f = b2.astype(jnp.float32)

    # Batch tile: multiple of 8 sublanes, capped at block_b, and small enough
    # that large batches give >=4 grid steps (so v7x's 2 TCs each pipeline >=2
    # tiles). tb>=512 already reaches ~85% of HBM BW, so this costs nothing.
    b_ceil = _round_up(B, 8)
    tb = min(block_b, b_ceil, max(512, _round_up(pl.cdiv(B, 4), 8)))
    tb = max(8, _round_up(tb, 8))

    # No jnp.pad: ragged last tile's OOB rows are garbage reads + masked writes,
    # which is safe because all math is per-row. (Keep it that way.)
    grid = (pl.cdiv(B, tb),)

    # Params: full-array blocks whose block index never changes -> resident in
    # VMEM across the whole batch grid (no per-step re-DMA). Footprint is tiny
    # (~100 KiB), so we skip single-buffering them (pl.Buffered(1)).
    resident = lambda a: pl.BlockSpec(a.shape, lambda i: (0, 0))

    consts = (w1b, b1f, w2b, b2f, w3p, b3p)
    param_bytes = sum(int(p.size) * p.dtype.itemsize for p in consts)
    cost = pl.CostEstimate(
        flops=2 * B * (IN_DIM * H1_DIM + H1_DIM * H2_DIM + H2_DIM * OUT_PAD),
        transcendentals=B * OUT_PAD,
        bytes_accessed=B * IN_DIM * 2 + B * OUT_PAD * 4 + param_bytes,
    )

    out = pl.pallas_call(
        mlp_kernel,
        out_shape=jax.ShapeDtypeStruct((B, OUT_PAD), jnp.float32),
        grid=grid,
        in_specs=[
            pl.BlockSpec((tb, IN_DIM), lambda i: (i, 0)),
            resident(w1b), resident(b1f),
            resident(w2b), resident(b2f),
            resident(w3p), resident(b3p),
        ],
        out_specs=pl.BlockSpec((tb, OUT_PAD), lambda i: (i, 0)),
        compiler_params=pltpu.CompilerParams(
            dimension_semantics=("parallel",),  # shard batch tiles across TCs (v7x)
        ),
        cost_estimate=cost,
    )(x, *consts)
    return out[:B, :OUT_DIM]


def init_params(key):
    """Deterministic init matching torch.nn.Linear shapes (stored as [in, out])."""
    def linear(key, fan_in, fan_out):
        k1, k2 = jax.random.split(key)
        bound = 1.0 / jnp.sqrt(fan_in)
        w = jax.random.uniform(k1, (fan_in, fan_out), jnp.float32, -bound, bound)
        b = jax.random.uniform(k2, (1, fan_out), jnp.float32, -bound, bound)
        return w, b

    k1, k2, k3 = jax.random.split(key, 3)
    w1, b1 = linear(k1, IN_DIM, H1_DIM)
    w2, b2 = linear(k2, H1_DIM, H2_DIM)
    w3, b3 = linear(k3, H2_DIM, OUT_DIM)
    return (w1, b1, w2, b2, w3, b3)


def reference_forward(img, params, matmul_dtype=jnp.float32):
    """Pure-JAX reference of the PyTorch forward.

    matmul_dtype=bfloat16 mimics the kernel's mixed-precision matmuls
    (bf16 operands, f32 accumulation) for a tight apples-to-apples check.
    """
    w1, b1, w2, b2, w3, b3 = params
    cast = lambda a: a.astype(matmul_dtype)
    dot = lambda a, b: jnp.dot(cast(a), cast(b), preferred_element_type=jnp.float32)
    x = img.reshape(img.shape[0], -1)
    x = jnp.maximum(dot(x, w1) + b1, 0.0)
    x = jnp.maximum(dot(x, w2) + b2, 0.0)
    logits = dot(x, w3) + b3
    return jax.nn.softmax(logits, axis=1)


if __name__ == "__main__":
    key = jax.random.PRNGKey(0)
    k_img, k_params = jax.random.split(key)
    params = init_params(k_params)

    # Case 1: small batch, single grid step.
    B = 8
    img = jax.random.normal(k_img, (B, 1, 28, 28), jnp.float32)
    out = jax.block_until_ready(custom_mlp_forward(img, params))
    assert out.shape == (B, 10)
    ref_mixed = reference_forward(img, params, matmul_dtype=jnp.bfloat16)
    ref_f32 = reference_forward(img, params, matmul_dtype=jnp.float32)
    assert jnp.allclose(out, ref_mixed, atol=2e-3, rtol=2e-3), "mismatch vs bf16 reference (B=8)"
    assert jnp.allclose(out, ref_f32, atol=2e-2, rtol=2e-2), "mismatch vs f32 reference (B=8)"
    assert jnp.allclose(jnp.sum(out, axis=1), 1.0, atol=1e-4), "rows must sum to 1"

    # Case 2: batch not a multiple of the tile -> exercises ragged last block
    # (no jnp.pad) and a multi-step grid.
    B2 = 20
    img2 = jax.random.normal(jax.random.PRNGKey(1), (B2, 1, 28, 28), jnp.float32)
    out2 = jax.block_until_ready(custom_mlp_forward(img2, params, block_b=8))
    assert out2.shape == (B2, 10)
    ref2_mixed = reference_forward(img2, params, matmul_dtype=jnp.bfloat16)
    ref2_f32 = reference_forward(img2, params, matmul_dtype=jnp.float32)
    assert jnp.allclose(out2, ref2_mixed, atol=2e-3, rtol=2e-3), "mismatch vs bf16 reference (B=20)"
    assert jnp.allclose(out2, ref2_f32, atol=2e-2, rtol=2e-2), "mismatch vs f32 reference (B=20)"
    assert jnp.allclose(jnp.sum(out2, axis=1), 1.0, atol=1e-4), "rows must sum to 1"

    print("KERNEL_OK")
</pallas_src>

<mosaic_0001>
module attributes {stable_mosaic.version = 11 : i64} {
  func.func @mlp_kernel(%arg0: i32, %arg1: memref<8x784xbf16, #tpu.memory_space<vmem>>, %arg2: memref<784x56xbf16, #tpu.memory_space<vmem>>, %arg3: memref<1x56xf32, #tpu.memory_space<vmem>>, %arg4: memref<56x16xbf16, #tpu.memory_space<vmem>>, %arg5: memref<1x16xf32, #tpu.memory_space<vmem>>, %arg6: memref<16x128xbf16, #tpu.memory_space<vmem>>, %arg7: memref<1x128xf32, #tpu.memory_space<vmem>>, %arg8: memref<8x128xf32, #tpu.memory_space<vmem>>) attributes {dimension_semantics = [#tpu.dimension_semantics<parallel>], iteration_bounds = array<i64: 1>, scalar_prefetch = 0 : i64, scratch_operands = 0 : i64, tpu.core_type = #tpu.core_type<tc>, window_params = [{transform_indices = @transform_0, window_bounds = array<i64: 8, 784>}, {pipeline_mode = #tpu.pipeline_mode<synchronous>, transform_indices = @transform_1, window_bounds = array<i64: 784, 56>}, {pipeline_mode = #tpu.pipeline_mode<synchronous>, transform_indices = @transform_2, window_bounds = array<i64: 1, 56>}, {pipeline_mode = #tpu.pipeline_mode<synchronous>, transform_indices = @transform_3, window_bounds = array<i64: 56, 16>}, {pipeline_mode = #tpu.pipeline_mode<synchronous>, transform_indices = @transform_4, window_bounds = array<i64: 1, 16>}, {pipeline_mode = #tpu.pipeline_mode<synchronous>, transform_indices = @transform_5, window_bounds = array<i64: 16, 128>}, {pipeline_mode = #tpu.pipeline_mode<synchronous>, transform_indices = @transform_6, window_bounds = array<i64: 1, 128>}, {transform_indices = @transform_7, window_bounds = array<i64: 8, 128>}]} {
    %c0 = arith.constant 0 : index
    %c0_0 = arith.constant 0 : index
    %0 = vector.load %arg1[%c0, %c0_0] : memref<8x784xbf16, #tpu.memory_space<vmem>>, vector<8x784xbf16>
    %c0_1 = arith.constant 0 : index
    %c0_2 = arith.constant 0 : index
    %1 = vector.load %arg2[%c0_1, %c0_2] : memref<784x56xbf16, #tpu.memory_space<vmem>>, vector<784x56xbf16>
    %cst = arith.constant dense<0.000000e+00> : vector<8x56xf32>
    %2 = tpu.matmul %0, %1, %cst {dimension_numbers = #tpu.dot_dimension_numbers<[1], [0], [0], [1], [0, 0, 1, 1], [], []>} : vector<8x784xbf16>, vector<784x56xbf16>, vector<8x56xf32> -> vector<8x56xf32>
    %c0_3 = arith.constant 0 : index
    %c0_4 = arith.constant 0 : index
    %3 = vector.load %arg3[%c0_3, %c0_4] : memref<1x56xf32, #tpu.memory_space<vmem>>, vector<1x56xf32>
    %4 = vector.broadcast %3 : vector<1x56xf32> to vector<8x56xf32>
    %5 = arith.addf %2, %4 : vector<8x56xf32>
    %cst_5 = arith.constant 0.000000e+00 : f32
    %6 = vector.broadcast %cst_5 : f32 to vector<8x56xf32>
    %7 = arith.maximumf %5, %6 : vector<8x56xf32>
    %8 = arith.truncf %7 : vector<8x56xf32> to vector<8x56xbf16>
    %c0_6 = arith.constant 0 : index
    %c0_7 = arith.constant 0 : index
    %9 = vector.load %arg4[%c0_6, %c0_7] : memref<56x16xbf16, #tpu.memory_space<vmem>>, vector<56x16xbf16>
    %cst_8 = arith.constant dense<0.000000e+00> : vector<8x16xf32>
    %10 = tpu.matmul %8, %9, %cst_8 {dimension_numbers = #tpu.dot_dimension_numbers<[1], [0], [0], [1], [0, 0, 1, 1], [], []>} : vector<8x56xbf16>, vector<56x16xbf16>, vector<8x16xf32> -> vector<8x16xf32>
    %c0_9 = arith.constant 0 : index
    %c0_10 = arith.constant 0 : index
    %11 = vector.load %arg5[%c0_9, %c0_10] : memref<1x16xf32, #tpu.memory_space<vmem>>, vector<1x16xf32>
    %12 = vector.broadcast %11 : vector<1x16xf32> to vector<8x16xf32>
    %13 = arith.addf %10, %12 : vector<8x16xf32>
    %cst_11 = arith.constant 0.000000e+00 : f32
    %14 = vector.broadcast %cst_11 : f32 to vector<8x16xf32>
    %15 = arith.maximumf %13, %14 : vector<8x16xf32>
    %16 = arith.truncf %15 : vector<8x16xf32> to vector<8x16xbf16>
    %c0_12 = arith.constant 0 : index
    %c0_13 = arith.constant 0 : index
    %17 = vector.load %arg6[%c0_12, %c0_13] : memref<16x128xbf16, #tpu.memory_space<vmem>>, vector<16x128xbf16>
    %cst_14 = arith.constant dense<0.000000e+00> : vector<8x128xf32>
    %18 = tpu.matmul %16, %17, %cst_14 {dimension_numbers = #tpu.dot_dimension_numbers<[1], [0], [0], [1], [0, 0, 1, 1], [], []>} : vector<8x16xbf16>, vector<16x128xbf16>, vector<8x128xf32> -> vector<8x128xf32>
    %c0_15 = arith.constant 0 : index
    %c0_16 = arith.constant 0 : index
    %19 = vector.load %arg7[%c0_15, %c0_16] : memref<1x128xf32, #tpu.memory_space<vmem>>, vector<1x128xf32>
    %20 = vector.broadcast %19 : vector<1x128xf32> to vector<8x128xf32>
    %21 = arith.addf %18, %20 : vector<8x128xf32>
    %cst_17 = arith.constant dense<0xFF800000> : vector<8xf32>
    %22 = vector.multi_reduction <maximumf>, %21, %cst_17 [1] : vector<8x128xf32> to vector<8xf32>
    %23 = vector.shape_cast %22 : vector<8xf32> to vector<8x1xf32>
    %24 = vector.broadcast %23 : vector<8x1xf32> to vector<8x128xf32>
    %25 = arith.subf %21, %24 : vector<8x128xf32>
    %26 = math.exp %25 : vector<8x128xf32>
    %cst_18 = arith.constant dense<0.000000e+00> : vector<8xf32>
    %27 = vector.multi_reduction <add>, %26, %cst_18 [1] : vector<8x128xf32> to vector<8xf32>
    %28 = vector.shape_cast %27 : vector<8xf32> to vector<8x1xf32>
    %29 = vector.broadcast %28 : vector<8x1xf32> to vector<8x128xf32>
    %30 = arith.divf %26, %29 : vector<8x128xf32>
    %c0_19 = arith.constant 0 : index
    %c0_20 = arith.constant 0 : index
    %31 = vector.load %arg8[%c0_19, %c0_20] : memref<8x128xf32, #tpu.memory_space<vmem>>, vector<8x128xf32>
    tpu.vector_store %arg8[%c0_19, %c0_20], %30 {strides = array<i32>} : memref<8x128xf32, #tpu.memory_space<vmem>>, vector<8x128xf32>,
    return
  }
  func.func @transform_0(%arg0: i32) -> (i32, i32) {
    %c0_i32 = arith.constant 0 : i32
    %c0_i32_0 = arith.constant 0 : i32
    return %arg0, %c0_i32 : i32, i32
  }
  func.func @transform_1(%arg0: i32) -> (i32, i32) {
    %c0_i32 = arith.constant 0 : i32
    %c0_i32_0 = arith.constant 0 : i32
    %c0_i32_1 = arith.constant 0 : i32
    return %c0_i32, %c0_i32_0 : i32, i32
  }
  func.func @transform_2(%arg0: i32) -> (i32, i32) {
    %c0_i32 = arith.constant 0 : i32
    %c0_i32_0 = arith.constant 0 : i32
    %c0_i32_1 = arith.constant 0 : i32
    return %c0_i32, %c0_i32_0 : i32, i32
  }
  func.func @transform_3(%arg0: i32) -> (i32, i32) {
    %c0_i32 = arith.constant 0 : i32
    %c0_i32_0 = arith.constant 0 : i32
    %c0_i32_1 = arith.constant 0 : i32
    return %c0_i32, %c0_i32_0 : i32, i32
  }
  func.func @transform_4(%arg0: i32) -> (i32, i32) {
    %c0_i32 = arith.constant 0 : i32
    %c0_i32_0 = arith.constant 0 : i32
    %c0_i32_1 = arith.constant 0 : i32
    return %c0_i32, %c0_i32_0 : i32, i32
  }
  func.func @transform_5(%arg0: i32) -> (i32, i32) {
    %c0_i32 = arith.constant 0 : i32
    %c0_i32_0 = arith.constant 0 : i32
    %c0_i32_1 = arith.constant 0 : i32
    return %c0_i32, %c0_i32_0 : i32, i32
  }
  func.func @transform_6(%arg0: i32) -> (i32, i32) {
    %c0_i32 = arith.constant 0 : i32
    %c0_i32_0 = arith.constant 0 : i32
    %c0_i32_1 = arith.constant 0 : i32
    return %c0_i32, %c0_i32_0 : i32, i32
  }
  func.func @transform_7(%arg0: i32) -> (i32, i32) {
    %c0_i32 = arith.constant 0 : i32
    %c0_i32_0 = arith.constant 0 : i32
    return %arg0, %c0_i32 : i32, i32
  }
}

</mosaic_0001>

<llo_original>
// kernel: tpu_custom_call.1
$region0: #{tpu_custom_call.1}
  #allocation0 [shape = 'u32[]', space=smem, size = 0x4, offset = 0x4, fixed_abs, tag = 'smem constant byte address 0x4 - core index']
  #allocation1 [shape = 'u32[144,128]{1,0:T(1,128)}', space=vmem, size = 0x12000, scoped, tag = 'internal scratch']
  %s0 = inlined_call_operand.vmem [shape: bf16[8,784], index: 0, kind: input, shape index: {}]
  %s1 = inlined_call_operand.vmem [shape: bf16[784,56], index: 1, kind: input, shape index: {}]
  %s2 = inlined_call_operand.vmem [shape: f32[1,56], index: 2, kind: input, shape index: {}]
  %s3 = inlined_call_operand.vmem [shape: bf16[56,16], index: 3, kind: input, shape index: {}]
  %s4 = inlined_call_operand.vmem [shape: f32[1,16], index: 4, kind: input, shape index: {}]
  %s5 = inlined_call_operand.vmem [shape: bf16[16,128], index: 5, kind: input, shape index: {}]
  %s6 = inlined_call_operand.vmem [shape: f32[1,128], index: 6, kind: input, shape index: {}]
  %s7 = inlined_call_operand.hbm [shape: f32[8,128], index: 7, kind: output, shape index: {}]
  %s8 = sld [smem:[#allocation0]]
  $region38: #{tpu_custom_call.1} parent=0
    _
  %s10 = ssub.s32 1, %s8
  %s11 = scalar_select 0, %s10, %s8
  $region1: #{tpu_custom_call.1} parent=0
    #allocation2 [shape = 'u8[4096]{0}', space=vmem, size = 0x1000, scoped, tag = 'output window, operand 0, single buffered']
    #allocation3 [shape = 's32[1]{0}', space=sflag, size = 0x4, scoped, tag = 'scoped memory for tpu_custom_call.1']
    %12 = vsyncpa [#allocation3], 0
    // Predicated region
    $region2: #{tpu_custom_call.1} parent=1 // pred_check
      _
    $region3: #{tpu_custom_call.1} parent=1 // pred_check_branch
      %14 = sbr.rel (0) target = $region5
    $region4: #{tpu_custom_call.1} parent=1 // pred_region
      _
    $region5: #{tpu_custom_call.1} parent=1 // pred_fallthru
      _
    // Predicated region
    $region6: #{tpu_custom_call.1} parent=1 // pred_check
      _
    $region7: #{tpu_custom_call.1} parent=1 // pred_check_branch
      %16 = sbr.rel (0) target = $region9
    $region8: #{tpu_custom_call.1} parent=1 // pred_region
      _
    $region9: #{tpu_custom_call.1} parent=1 // pred_fallthru
      _
    // Predicated region
    $region10: #{tpu_custom_call.1} parent=1 // pred_check
      _
    $region11: #{tpu_custom_call.1} parent=1 // pred_check_branch
      %18 = sbr.rel (0) target = $region13
    $region12: #{tpu_custom_call.1} parent=1 // pred_region
      _
    $region13: #{tpu_custom_call.1} parent=1 // pred_fallthru
      _
    // Predicated region
    $region14: #{tpu_custom_call.1} parent=1 // pred_check
      _
    $region15: #{tpu_custom_call.1} parent=1 // pred_check_branch
      %20 = sbr.rel (0) target = $region17
    $region16: #{tpu_custom_call.1} parent=1 // pred_region
      _
    $region17: #{tpu_custom_call.1} parent=1 // pred_fallthru
      _
    // Predicated region
    $region18: #{tpu_custom_call.1} parent=1 // pred_check
      _
    $region19: #{tpu_custom_call.1} parent=1 // pred_check_branch
      %22 = sbr.rel (0) target = $region21
    $region20: #{tpu_custom_call.1} parent=1 // pred_region
      _
    $region21: #{tpu_custom_call.1} parent=1 // pred_fallthru
      _
    // Predicated region
    $region22: #{tpu_custom_call.1} parent=1 // pred_check
      _
    $region23: #{tpu_custom_call.1} parent=1 // pred_check_branch
      %24 = sbr.rel (0) target = $region25
    $region24: #{tpu_custom_call.1} parent=1 // pred_region
      _
    $region25: #{tpu_custom_call.1} parent=1 // pred_fallthru
      _
    // Predicated region
    $region26: #{tpu_custom_call.1} parent=1 // pred_check
      _
    $region27: #{tpu_custom_call.1} parent=1 // pred_check_branch
      %26 = sbr.rel (0) target = $region29
    $region28: #{tpu_custom_call.1} parent=1 // pred_region
      _
    $region29: #{tpu_custom_call.1} parent=1 // pred_fallthru
      _
    %v28 = vld [vmem:[%s0] sm:$0xff]
    %v29 = vld [vmem:[%s0 + $0x8] sm:$0xff]
    %v30 = vld [vmem:[%s0 + $0x10] sm:$0xff]
    %v31 = vld [vmem:[%s0 + $0x18] sm:$0xf]
    %v32 = vld [vmem:[%s1] sm:$0xf]
    %v33 = vld [vmem:[%s1 + $0x4] sm:$0xf]
    %v34 = vld [vmem:[%s1 + $0x8] sm:$0xf]
    %v35 = vld [vmem:[%s1 + $0xc] sm:$0xf]
    %v36 = vld [vmem:[%s1 + $0x10] sm:$0xf]
    %v37 = vld [vmem:[%s1 + $0x14] sm:$0xf]
    %v38 = vld [vmem:[%s1 + $0x18] sm:$0xf]
    %v39 = vld [vmem:[%s1 + $0x1c] sm:$0xf]
    %v40 = vld [vmem:[%s1 + $0x20] sm:$0xf]
    %v41 = vld [vmem:[%s1 + $0x24] sm:$0xf]
    %v42 = vld [vmem:[%s1 + $0x28] sm:$0xf]
    %v43 = vld [vmem:[%s1 + $0x2c] sm:$0xf]
    %v44 = vld [vmem:[%s1 + $0x30] sm:$0xf]
    %v45 = vld [vmem:[%s1 + $0x34] sm:$0xf]
    %v46 = vld [vmem:[%s1 + $0x38] sm:$0xf]
    %v47 = vld [vmem:[%s1 + $0x3c] sm:$0xf]
    %v48 = vld [vmem:[%s1 + $0x40] sm:$0xf]
    %v49 = vld [vmem:[%s1 + $0x44] sm:$0xf]
    %v50 = vld [vmem:[%s1 + $0x48] sm:$0xf]
    %v51 = vld [vmem:[%s1 + $0x4c] sm:$0xf]
    %v52 = vld [vmem:[%s1 + $0x50] sm:$0xf]
    %v53 = vld [vmem:[%s1 + $0x54] sm:$0xf]
    %v54 = vld [vmem:[%s1 + $0x58] sm:$0xf]
    %v55 = vld [vmem:[%s1 + $0x5c] sm:$0xf]
    %v56 = vld [vmem:[%s1 + $0x60] sm:$0xf]
    %v57 = vld [vmem:[%s1 + $0x64] sm:$0xf]
    %v58 = vld [vmem:[%s1 + $0x68] sm:$0xf]
    %v59 = vld [vmem:[%s1 + $0x6c] sm:$0xf]
    %v60 = vld [vmem:[%s1 + $0x70] sm:$0xf]
    %v61 = vld [vmem:[%s1 + $0x74] sm:$0xf]
    %v62 = vld [vmem:[%s1 + $0x78] sm:$0xf]
    %v63 = vld [vmem:[%s1 + $0x7c] sm:$0xf]
    %v64 = vld [vmem:[%s1 + $0x80] sm:$0xf]
    %v65 = vld [vmem:[%s1 + $0x84] sm:$0xf]
    %v66 = vld [vmem:[%s1 + $0x88] sm:$0xf]
    %v67 = vld [vmem:[%s1 + $0x8c] sm:$0xf]
    %v68 = vld [vmem:[%s1 + $0x90] sm:$0xf]
    %v69 = vld [vmem:[%s1 + $0x94] sm:$0xf]
    %v70 = vld [vmem:[%s1 + $0x98] sm:$0xf]
    %v71 = vld [vmem:[%s1 + $0x9c] sm:$0xf]
    %v72 = vld [vmem:[%s1 + $0xa0] sm:$0xf]
    %v73 = vld [vmem:[%s1 + $0xa4] sm:$0xf]
    %v74 = vld [vmem:[%s1 + $0xa8] sm:$0xf]
    %v75 = vld [vmem:[%s1 + $0xac] sm:$0xf]
    %v76 = vld [vmem:[%s1 + $0xb0] sm:$0xf]
    %v77 = vld [vmem:[%s1 + $0xb4] sm:$0xf]
    %v78 = vld [vmem:[%s1 + $0xb8] sm:$0xf]
    %v79 = vld [vmem:[%s1 + $0xbc] sm:$0xf]
    %v80 = vld [vmem:[%s1 + $0xc0] sm:$0xf]
    %v81 = vld [vmem:[%s1 + $0xc4] sm:$0xf]
    %v82 = vld [vmem:[%s1 + $0xc8] sm:$0xf]
    %v83 = vld [vmem:[%s1 + $0xcc] sm:$0xf]
    %v84 = vld [vmem:[%s1 + $0xd0] sm:$0xf]
    %v85 = vld [vmem:[%s1 + $0xd4] sm:$0xf]
    %v86 = vld [vmem:[%s1 + $0xd8] sm:$0xf]
    %v87 = vld [vmem:[%s1 + $0xdc] sm:$0xf]
    %v88 = vld [vmem:[%s1 + $0xe0] sm:$0xf]
    %v89 = vld [vmem:[%s1 + $0xe4] sm:$0xf]
    %v90 = vld [vmem:[%s1 + $0xe8] sm:$0xf]
    %v91 = vld [vmem:[%s1 + $0xec] sm:$0xf]
    %v92 = vld [vmem:[%s1 + $0xf0] sm:$0xf]
    %v93 = vld [vmem:[%s1 + $0xf4] sm:$0xf]
    %v94 = vld [vmem:[%s1 + $0xf8] sm:$0xf]
    %v95 = vld [vmem:[%s1 + $0xfc] sm:$0xf]
    %v96 = vld [vmem:[%s1 + $0x100] sm:$0xf]
    %v97 = vld [vmem:[%s1 + $0x104] sm:$0xf]
    %v98 = vld [vmem:[%s1 + $0x108] sm:$0xf]
    %v99 = vld [vmem:[%s1 + $0x10c] sm:$0xf]
    %v100 = vld [vmem:[%s1 + $0x110] sm:$0xf]
    %v101 = vld [vmem:[%s1 + $0x114] sm:$0xf]
    %v102 = vld [vmem:[%s1 + $0x118] sm:$0xf]
    %v103 = vld [vmem:[%s1 + $0x11c] sm:$0xf]
    %v104 = vld [vmem:[%s1 + $0x120] sm:$0xf]
    %v105 = vld [vmem:[%s1 + $0x124] sm:$0xf]
    %v106 = vld [vmem:[%s1 + $0x128] sm:$0xf]
    %v107 = vld [vmem:[%s1 + $0x12c] sm:$0xf]
    %v108 = vld [vmem:[%s1 + $0x130] sm:$0xf]
    %v109 = vld [vmem:[%s1 + $0x134] sm:$0xf]
    %v110 = vld [vmem:[%s1 + $0x138] sm:$0xf]
    %v111 = vld [vmem:[%s1 + $0x13c] sm:$0xf]
    %v112 = vld [vmem:[%s1 + $0x140] sm:$0xf]
    %v113 = vld [vmem:[%s1 + $0x144] sm:$0xf]
    %v114 = vld [vmem:[%s1 + $0x148] sm:$0xf]
    %v115 = vld [vmem:[%s1 + $0x14c] sm:$0xf]
    %v116 = vld [vmem:[%s1 + $0x150] sm:$0xf]
    %v117 = vld [vmem:[%s1 + $0x154] sm:$0xf]
    %v118 = vld [vmem:[%s1 + $0x158] sm:$0xf]
    %v119 = vld [vmem:[%s1 + $0x15c] sm:$0xf]
    %v120 = vld [vmem:[%s1 + $0x160] sm:$0xf]
    %v121 = vld [vmem:[%s1 + $0x164] sm:$0xf]
    %v122 = vld [vmem:[%s1 + $0x168] sm:$0xf]
    %v123 = vld [vmem:[%s1 + $0x16c] sm:$0xf]
    %v124 = vld [vmem:[%s1 + $0x170] sm:$0xf]
    %v125 = vld [vmem:[%s1 + $0x174] sm:$0xf]
    %v126 = vld [vmem:[%s1 + $0x178] sm:$0xf]
    %v127 = vld [vmem:[%s1 + $0x17c] sm:$0xf]
    %v128 = vld [vmem:[%s1 + $0x180] sm:$0xf]
    %v129 = vld [vmem:[%s1 + $0x184] sm:$0xf]
    %v130 = vld [vmem:[%s2] sm:$0x1]
    %v132 = vlaneseq
    %v133 = vshrl.u32 %v132, 7
    %v134 = vsub.s32 0, %v133
    %v135 = vrot.slane %v130, %v134
    %v141 = vunpack.c.l.b16 %v28
    %v142 = vunpack.c.h.b16 %v28
    %v143 = vunpack.c.l.b16 %v29
    %v144 = vunpack.c.h.b16 %v29
    %v145 = vunpack.c.l.b16 %v30
    %v146 = vunpack.c.h.b16 %v30
    %v147 = vunpack.c.l.b16 %v31
    %v148 = vpack.c.b16 %v141, %v141
    %v149 = vpack.c.b16 %v142, %v142
    %v150 = vpack.c.b16 %v143, %v143
    %v151 = vpack.c.b16 %v144, %v144
    %v152 = vpack.c.b16 %v145, %v145
    %v153 = vpack.c.b16 %v146, %v146
    %v154 = vpack.c.b16 %v147, %v147
    %v259 = vunpack.c.l.b16 %v32
    %v260 = vunpack.c.l.b16 %v33
    %v261 = vunpack.c.l.b16 %v34
    %v262 = vunpack.c.l.b16 %v35
    %v263 = vunpack.c.l.b16 %v36
    %v264 = vunpack.c.l.b16 %v37
    %v265 = vunpack.c.l.b16 %v38
    %v266 = vunpack.c.l.b16 %v39
    %v267 = vunpack.c.l.b16 %v40
    %v268 = vunpack.c.l.b16 %v41
    %v269 = vunpack.c.l.b16 %v42
    %v270 = vunpack.c.l.b16 %v43
    %v271 = vunpack.c.l.b16 %v44
    %v272 = vunpack.c.l.b16 %v45
    %v273 = vunpack.c.l.b16 %v46
    %v274 = vunpack.c.l.b16 %v47
    %v275 = vunpack.c.l.b16 %v48
    %v276 = vunpack.c.l.b16 %v49
    %v277 = vunpack.c.l.b16 %v50
    %v278 = vunpack.c.l.b16 %v51
    %v279 = vunpack.c.l.b16 %v52
    %v280 = vunpack.c.l.b16 %v53
    %v281 = vunpack.c.l.b16 %v54
    %v282 = vunpack.c.l.b16 %v55
    %v283 = vunpack.c.l.b16 %v56
    %v284 = vunpack.c.l.b16 %v57
    %v285 = vunpack.c.l.b16 %v58
    %v286 = vunpack.c.l.b16 %v59
    %v287 = vunpack.c.l.b16 %v60
    %v288 = vunpack.c.l.b16 %v61
    %v289 = vunpack.c.l.b16 %v62
    %v290 = vunpack.c.l.b16 %v63
    %v291 = vunpack.c.l.b16 %v64
    %v292 = vunpack.c.l.b16 %v65
    %v293 = vunpack.c.l.b16 %v66
    %v294 = vunpack.c.l.b16 %v67
    %v295 = vunpack.c.l.b16 %v68
    %v296 = vunpack.c.l.b16 %v69
    %v297 = vunpack.c.l.b16 %v70
    %v298 = vunpack.c.l.b16 %v71
    %v299 = vunpack.c.l.b16 %v72
    %v300 = vunpack.c.l.b16 %v73
    %v301 = vunpack.c.l.b16 %v74
    %v302 = vunpack.c.l.b16 %v75
    %v303 = vunpack.c.l.b16 %v76
    %v304 = vunpack.c.l.b16 %v77
    %v305 = vunpack.c.l.b16 %v78
    %v306 = vunpack.c.l.b16 %v79
    %v307 = vunpack.c.l.b16 %v80
    %v308 = vunpack.c.l.b16 %v81
    %v309 = vunpack.c.l.b16 %v82
    %v310 = vunpack.c.l.b16 %v83
    %v311 = vunpack.c.l.b16 %v84
    %v312 = vunpack.c.l.b16 %v85
    %v313 = vunpack.c.l.b16 %v86
    %v314 = vunpack.c.l.b16 %v87
    %v315 = vunpack.c.l.b16 %v88
    %v316 = vunpack.c.l.b16 %v89
    %v317 = vunpack.c.l.b16 %v90
    %v318 = vunpack.c.l.b16 %v91
    %v319 = vunpack.c.l.b16 %v92
    %v320 = vunpack.c.l.b16 %v93
    %v321 = vunpack.c.l.b16 %v94
    %v322 = vunpack.c.l.b16 %v95
    %v323 = vunpack.c.l.b16 %v96
    %v324 = vunpack.c.l.b16 %v97
    %v325 = vunpack.c.l.b16 %v98
    %v326 = vunpack.c.l.b16 %v99
    %v327 = vunpack.c.l.b16 %v100
    %v328 = vunpack.c.l.b16 %v101
    %v329 = vunpack.c.l.b16 %v102
    %v330 = vunpack.c.l.b16 %v103
    %v331 = vunpack.c.l.b16 %v104
    %v332 = vunpack.c.l.b16 %v105
    %v333 = vunpack.c.l.b16 %v106
    %v334 = vunpack.c.l.b16 %v107
    %v335 = vunpack.c.l.b16 %v108
    %v336 = vunpack.c.l.b16 %v109
    %v337 = vunpack.c.l.b16 %v110
    %v338 = vunpack.c.l.b16 %v111
    %v339 = vunpack.c.l.b16 %v112
    %v340 = vunpack.c.l.b16 %v113
    %v341 = vunpack.c.l.b16 %v114
    %v342 = vunpack.c.l.b16 %v115
    %v343 = vunpack.c.l.b16 %v116
    %v344 = vunpack.c.l.b16 %v117
    %v345 = vunpack.c.l.b16 %v118
    %v346 = vunpack.c.l.b16 %v119
    %v347 = vunpack.c.l.b16 %v120
    %v348 = vunpack.c.l.b16 %v121
    %v349 = vunpack.c.l.b16 %v122
    %v350 = vunpack.c.l.b16 %v123
    %v351 = vunpack.c.l.b16 %v124
    %v352 = vunpack.c.l.b16 %v125
    %v353 = vunpack.c.l.b16 %v126
    %v354 = vunpack.c.l.b16 %v127
    %v355 = vunpack.c.l.b16 %v128
    %v356 = vunpack.c.l.b16 %v129
    %v357 = vpack.c.b16 %v260, %v259
    %v358 = vpack.c.b16 %v262, %v261
    %v359 = vpack.c.b16 %v264, %v263
    %v360 = vpack.c.b16 %v266, %v265
    %v361 = vpack.c.b16 %v268, %v267
    %v362 = vpack.c.b16 %v270, %v269
    %v363 = vpack.c.b16 %v272, %v271
    %v364 = vpack.c.b16 %v274, %v273
    %v365 = vpack.c.b16 %v276, %v275
    %v366 = vpack.c.b16 %v278, %v277
    %v367 = vpack.c.b16 %v280, %v279
    %v368 = vpack.c.b16 %v282, %v281
    %v369 = vpack.c.b16 %v284, %v283
    %v370 = vpack.c.b16 %v286, %v285
    %v371 = vpack.c.b16 %v288, %v287
    %v372 = vpack.c.b16 %v290, %v289
    %v373 = vpack.c.b16 %v292, %v291
    %v374 = vpack.c.b16 %v294, %v293
    %v375 = vpack.c.b16 %v296, %v295
    %v376 = vpack.c.b16 %v298, %v297
    %v377 = vpack.c.b16 %v300, %v299
    %v378 = vpack.c.b16 %v302, %v301
    %v379 = vpack.c.b16 %v304, %v303
    %v380 = vpack.c.b16 %v306, %v305
    %v381 = vpack.c.b16 %v308, %v307
    %v382 = vpack.c.b16 %v310, %v309
    %v383 = vpack.c.b16 %v312, %v311
    %v384 = vpack.c.b16 %v314, %v313
    %v385 = vpack.c.b16 %v316, %v315
    %v386 = vpack.c.b16 %v318, %v317
    %v387 = vpack.c.b16 %v320, %v319
    %v388 = vpack.c.b16 %v322, %v321
    %v389 = vpack.c.b16 %v324, %v323
    %v390 = vpack.c.b16 %v326, %v325
    %v391 = vpack.c.b16 %v328, %v327
    %v392 = vpack.c.b16 %v330, %v329
    %v393 = vpack.c.b16 %v332, %v331
    %v394 = vpack.c.b16 %v334, %v333
    %v395 = vpack.c.b16 %v336, %v335
    %v396 = vpack.c.b16 %v338, %v337
    %v397 = vpack.c.b16 %v340, %v339
    %v398 = vpack.c.b16 %v342, %v341
    %v399 = vpack.c.b16 %v344, %v343
    %v400 = vpack.c.b16 %v346, %v345
    %v401 = vpack.c.b16 %v348, %v347
    %v402 = vpack.c.b16 %v350, %v349
    %v403 = vpack.c.b16 %v352, %v351
    %v404 = vpack.c.b16 %v354, %v353
    %v405 = vpack.c.b16 %v356, %v355
    %vm455 = vcmask 130048
    %v457 = vsel %vm455, %v154, 0
    %459 = vmatprep.subr.bf16.mxu0 0
    %460 = vmatpush1.bf16.msra.mxu0 %v357
    %461 = vmatprep.subr.bf16.mxu0 0
    %462 = vmatpush1.bf16.msra.mxu0 %v358
    %463 = vmatprep.subr.bf16.mxu0 0
    %464 = vmatpush1.bf16.msra.mxu0 %v359
    %465 = vmatprep.subr.bf16.mxu0 0
    %466 = vmatpush1.bf16.msra.mxu0 %v360
    %467 = vmatprep.subr.bf16.mxu0 0
    %468 = vmatpush1.bf16.msra.mxu0 %v361
    %469 = vmatprep.subr.bf16.mxu0 0
    %470 = vmatpush1.bf16.msra.mxu0 %v362
    %471 = vmatprep.subr.bf16.mxu0 0
    %472 = vmatpush1.bf16.msra.mxu0 %v363
    %473 = vmatprep.subr.bf16.mxu0 0
    %474 = vmatpush1.bf16.msra.mxu0 %v364
    %475 = vmatprep.subr.bf16.mxu0 0
    %476 = vmatpush1.bf16.msra.mxu0 %v365
    %477 = vmatprep.subr.bf16.mxu0 0
    %478 = vmatpush1.bf16.msra.mxu0 %v366
    %479 = vmatprep.subr.bf16.mxu0 0
    %480 = vmatpush1.bf16.msra.mxu0 %v367
    %481 = vmatprep.subr.bf16.mxu0 0
    %482 = vmatpush1.bf16.msra.mxu0 %v368
    %483 = vmatprep.subr.bf16.mxu0 0
    %484 = vmatpush1.bf16.msra.mxu0 %v369
    %485 = vmatprep.subr.bf16.mxu0 0
    %486 = vmatpush1.bf16.msra.mxu0 %v370
    %487 = vmatprep.subr.bf16.mxu0 0
    %488 = vmatpush1.bf16.msra.mxu0 %v371
    %489 = vmatprep.subr.bf16.mxu0 0
    %490 = vmatpush1.bf16.msra.mxu0 %v372
    %491 = vmatprep.mubr.bf16.mxu0 %v149
    %492 = vmatmul.mubr.bf16.gmra.mrb[0].mxu0 %v148
    %v493 = vpop.f32.mrb[0].mxu0
    %v494 = vadd.f32 %v135, %v493
    %v495 = vpop.f32.mrb[0].mxu0
    %v496 = vpop.f32.mrb[0].mxu0
    %v497 = vpop.f32.mrb[0].mxu0
    %498 = vdwg.mxu0
    %499 = vmatprep.subr.bf16.mxu0 0
    %500 = vmatpush1.bf16.msra.mxu0 %v373
    %501 = vmatprep.subr.bf16.mxu0 0
    %502 = vmatpush1.bf16.msra.mxu0 %v374
    %503 = vmatprep.subr.bf16.mxu0 0
    %504 = vmatpush1.bf16.msra.mxu0 %v375
    %505 = vmatprep.subr.bf16.mxu0 0
    %506 = vmatpush1.bf16.msra.mxu0 %v376
    %507 = vmatprep.subr.bf16.mxu0 0
    %508 = vmatpush1.bf16.msra.mxu0 %v377
    %509 = vmatprep.subr.bf16.mxu0 0
    %510 = vmatpush1.bf16.msra.mxu0 %v378
    %511 = vmatprep.subr.bf16.mxu0 0
    %512 = vmatpush1.bf16.msra.mxu0 %v379
    %513 = vmatprep.subr.bf16.mxu0 0
    %514 = vmatpush1.bf16.msra.mxu0 %v380
    %515 = vmatprep.subr.bf16.mxu0 0
    %516 = vmatpush1.bf16.msra.mxu0 %v381
    %517 = vmatprep.subr.bf16.mxu0 0
    %518 = vmatpush1.bf16.msra.mxu0 %v382
    %519 = vmatprep.subr.bf16.mxu0 0
    %520 = vmatpush1.bf16.msra.mxu0 %v383
    %521 = vmatprep.subr.bf16.mxu0 0
    %522 = vmatpush1.bf16.msra.mxu0 %v384
    %523 = vmatprep.subr.bf16.mxu0 0
    %524 = vmatpush1.bf16.msra.mxu0 %v385
    %525 = vmatprep.subr.bf16.mxu0 0
    %526 = vmatpush1.bf16.msra.mxu0 %v386
    %527 = vmatprep.subr.bf16.mxu0 0
    %528 = vmatpush1.bf16.msra.mxu0 %v387
    %529 = vmatprep.subr.bf16.mxu0 0
    %530 = vmatpush1.bf16.msra.mxu0 %v388
    %531 = vmatprep.mubr.bf16.mxu0 %v151
    %532 = vmatmul.mubr.bf16.gmra.mrb[0].mxu0 %v150
    %v533 = vpop.f32.mrb[0].mxu0
    %v534 = vadd.f32 %v494, %v533
    %v535 = vpop.f32.mrb[0].mxu0
    %v536 = vpop.f32.mrb[0].mxu0
    %v537 = vpop.f32.mrb[0].mxu0
    %538 = vdwg.mxu0
    %539 = vmatprep.subr.bf16.mxu0 0
    %540 = vmatpush1.bf16.msra.mxu0 %v389
    %541 = vmatprep.subr.bf16.mxu0 0
    %542 = vmatpush1.bf16.msra.mxu0 %v390
    %543 = vmatprep.subr.bf16.mxu0 0
    %544 = vmatpush1.bf16.msra.mxu0 %v391
    %545 = vmatprep.subr.bf16.mxu0 0
    %546 = vmatpush1.bf16.msra.mxu0 %v392
    %547 = vmatprep.subr.bf16.mxu0 0
    %548 = vmatpush1.bf16.msra.mxu0 %v393
    %549 = vmatprep.subr.bf16.mxu0 0
    %550 = vmatpush1.bf16.msra.mxu0 %v394
    %551 = vmatprep.subr.bf16.mxu0 0
    %552 = vmatpush1.bf16.msra.mxu0 %v395
    %553 = vmatprep.subr.bf16.mxu0 0
    %554 = vmatpush1.bf16.msra.mxu0 %v396
    %555 = vmatprep.subr.bf16.mxu0 0
    %556 = vmatpush1.bf16.msra.mxu0 %v397
    %557 = vmatprep.subr.bf16.mxu0 0
    %558 = vmatpush1.bf16.msra.mxu0 %v398
    %559 = vmatprep.subr.bf16.mxu0 0
    %560 = vmatpush1.bf16.msra.mxu0 %v399
    %561 = vmatprep.subr.bf16.mxu0 0
    %562 = vmatpush1.bf16.msra.mxu0 %v400
    %563 = vmatprep.subr.bf16.mxu0 0
    %564 = vmatpush1.bf16.msra.mxu0 %v401
    %565 = vmatprep.subr.bf16.mxu0 0
    %566 = vmatpush1.bf16.msra.mxu0 %v402
    %567 = vmatprep.subr.bf16.mxu0 0
    %568 = vmatpush1.bf16.msra.mxu0 %v403
    %569 = vmatprep.subr.bf16.mxu0 0
    %570 = vmatpush1.bf16.msra.mxu0 %v404
    %571 = vmatprep.mubr.bf16.mxu0 %v153
    %572 = vmatmul.mubr.bf16.gmra.mrb[0].mxu0 %v152
    %v573 = vpop.f32.mrb[0].mxu0
    %v574 = vadd.f32 %v534, %v573
    %v575 = vpop.f32.mrb[0].mxu0
    %v576 = vpop.f32.mrb[0].mxu0
    %v577 = vpop.f32.mrb[0].mxu0
    %578 = vdwg.mxu0
    %579 = vmatprep.subr.bf16.mxu0 0
    %580 = vmatpush1.bf16.msra.mxu0 %v405
    %581 = vmatprep.subr.bf16.mxu0 0
    %582 = vmatpush1.bf16.msra.mxu0 0
    %583 = vmatprep.subr.bf16.mxu0 0
    %584 = vmatpush1.bf16.msra.mxu0 0
    %585 = vmatprep.subr.bf16.mxu0 0
    %586 = vmatpush1.bf16.msra.mxu0 0
    %587 = vmatprep.subr.bf16.mxu0 0
    %588 = vmatpush1.bf16.msra.mxu0 0
    %589 = vmatprep.subr.bf16.mxu0 0
    %590 = vmatpush1.bf16.msra.mxu0 0
    %591 = vmatprep.subr.bf16.mxu0 0
    %592 = vmatpush1.bf16.msra.mxu0 0
    %593 = vmatprep.subr.bf16.mxu0 0
    %594 = vmatpush1.bf16.msra.mxu0 0
    %595 = vmatprep.subr.bf16.mxu0 0
    %596 = vmatpush1.bf16.msra.mxu0 0
    %597 = vmatprep.subr.bf16.mxu0 0
    %598 = vmatpush1.bf16.msra.mxu0 0
    %599 = vmatprep.subr.bf16.mxu0 0
    %600 = vmatpush1.bf16.msra.mxu0 0
    %601 = vmatprep.subr.bf16.mxu0 0
    %602 = vmatpush1.bf16.msra.mxu0 0
    %603 = vmatprep.subr.bf16.mxu0 0
    %604 = vmatpush1.bf16.msra.mxu0 0
    %605 = vmatprep.subr.bf16.mxu0 0
    %606 = vmatpush1.bf16.msra.mxu0 0
    %607 = vmatprep.subr.bf16.mxu0 0
    %608 = vmatpush1.bf16.msra.mxu0 0
    %609 = vmatprep.subr.bf16.mxu0 0
    %610 = vmatpush1.bf16.msra.mxu0 0
    %611 = vmatprep.mubr.bf16.mxu0 0
    %612 = vmatmul.mubr.bf16.gmra.mrb[0].mxu0 %v457
    %v613 = vpop.f32.mrb[0].mxu0
    %v614 = vadd.f32 %v574, %v613
    %v615 = vpop.f32.mrb[0].mxu0
    %v616 = vpop.f32.mrb[0].mxu0
    %v617 = vpop.f32.mrb[0].mxu0
    %618 = vdwg.mxu0
    %v619 = vmax.f32 %v614, 0.0
    %v620 = vpack.c.bf16 %v619, %v619
    %v621 = vld [vmem:[%s3] sm:$0xf]
    %v622 = vld [vmem:[%s3 + $0x4] sm:$0xf]
    %v623 = vld [vmem:[%s3 + $0x8] sm:$0xf]
    %v624 = vld [vmem:[%s3 + $0xc] sm:$0xf]
    %v625 = vld [vmem:[%s3 + $0x10] sm:$0xf]
    %v626 = vld [vmem:[%s3 + $0x14] sm:$0xf]
    %v627 = vld [vmem:[%s3 + $0x18] sm:$0xf]
    %v628 = vld [vmem:[%s4] sm:$0x1]
    %v630 = vlaneseq
    %v631 = vshrl.u32 %v630, 7
    %v632 = vsub.s32 0, %v631
    %v633 = vrot.slane %v628, %v632
    %v642 = vunpack.c.l.b16 %v621
    %v643 = vunpack.c.l.b16 %v622
    %v644 = vunpack.c.l.b16 %v623
    %v645 = vunpack.c.l.b16 %v624
    %v646 = vunpack.c.l.b16 %v625
    %v647 = vunpack.c.l.b16 %v626
    %v648 = vunpack.c.l.b16 %v627
    %v649 = vpack.c.b16 %v643, %v642
    %v650 = vpack.c.b16 %v645, %v644
    %v651 = vpack.c.b16 %v647, %v646
    %v652 = vpack.c.b16 %v648, %v648
    %vm656 = vcmask 457728
    %v658 = vsel %vm656, %v620, 0
    %vm660 = vcmask 1043456
    %v662 = vsel %vm660, %v652, 0
    %664 = vmatprep.subr.bf16.mxu0 0
    %665 = vmatpush1.bf16.msra.mxu0 %v649
    %666 = vmatprep.subr.bf16.mxu0 0
    %667 = vmatpush1.bf16.msra.mxu0 %v650
    %668 = vmatprep.subr.bf16.mxu0 0
    %669 = vmatpush1.bf16.msra.mxu0 %v651
    %670 = vmatprep.subr.bf16.mxu0 0
    %671 = vmatpush1.bf16.msra.mxu0 %v662
    %672 = vmatprep.subr.bf16.mxu0 0
    %673 = vmatpush1.bf16.msra.mxu0 0
    %674 = vmatprep.subr.bf16.mxu0 0
    %675 = vmatpush1.bf16.msra.mxu0 0
    %676 = vmatprep.subr.bf16.mxu0 0
    %677 = vmatpush1.bf16.msra.mxu0 0
    %678 = vmatprep.subr.bf16.mxu0 0
    %679 = vmatpush1.bf16.msra.mxu0 0
    %680 = vmatprep.subr.bf16.mxu0 0
    %681 = vmatpush1.bf16.msra.mxu0 0
    %682 = vmatprep.subr.bf16.mxu0 0
    %683 = vmatpush1.bf16.msra.mxu0 0
    %684 = vmatprep.subr.bf16.mxu0 0
    %685 = vmatpush1.bf16.msra.mxu0 0
    %686 = vmatprep.subr.bf16.mxu0 0
    %687 = vmatpush1.bf16.msra.mxu0 0
    %688 = vmatprep.subr.bf16.mxu0 0
    %689 = vmatpush1.bf16.msra.mxu0 0
    %690 = vmatprep.subr.bf16.mxu0 0
    %691 = vmatpush1.bf16.msra.mxu0 0
    %692 = vmatprep.subr.bf16.mxu0 0
    %693 = vmatpush1.bf16.msra.mxu0 0
    %694 = vmatprep.subr.bf16.mxu0 0
    %695 = vmatpush1.bf16.msra.mxu0 0
    %696 = vmatprep.mubr.bf16.mxu0 0
    %697 = vmatmul.mubr.bf16.gmra.mrb[0].mxu0 %v658
    %v698 = vpop.f32.mrb[0].mxu0
    %v699 = vadd.f32 %v633, %v698
    %v700 = vpop.f32.mrb[0].mxu0
    %v701 = vpop.f32.mrb[0].mxu0
    %v702 = vpop.f32.mrb[0].mxu0
    %703 = vdwg.mxu0
    %v704 = vmax.f32 %v699, 0.0
    %v705 = vpack.c.bf16 %v704, %v704
    %v706 = vld [vmem:[%s5] sm:$0xf]
    %v707 = vld [vmem:[%s5 + $0x4] sm:$0xf]
    %v708 = vld [vmem:[%s6] sm:$0x1]
    %v710 = vlaneseq
    %v711 = vshrl.u32 %v710, 7
    %v712 = vsub.s32 0, %v711
    %v713 = vrot.slane %v708, %v712
    %v717 = vunpack.c.l.b16 %v706
    %v718 = vunpack.c.l.b16 %v707
    %v719 = vpack.c.b16 %v718, %v717
    %v722 = vsel %vm455, %v705, 0
    %724 = vmatprep.subr.bf16.mxu0 0
    %725 = vmatpush1.bf16.msra.mxu0 %v719
    %726 = vmatprep.subr.bf16.mxu0 0
    %727 = vmatpush1.bf16.msra.mxu0 0
    %728 = vmatprep.subr.bf16.mxu0 0
    %729 = vmatpush1.bf16.msra.mxu0 0
    %730 = vmatprep.subr.bf16.mxu0 0
    %731 = vmatpush1.bf16.msra.mxu0 0
    %732 = vmatprep.subr.bf16.mxu0 0
    %733 = vmatpush1.bf16.msra.mxu0 0
    %734 = vmatprep.subr.bf16.mxu0 0
    %735 = vmatpush1.bf16.msra.mxu0 0
    %736 = vmatprep.subr.bf16.mxu0 0
    %737 = vmatpush1.bf16.msra.mxu0 0
    %738 = vmatprep.subr.bf16.mxu0 0
    %739 = vmatpush1.bf16.msra.mxu0 0
    %740 = vmatprep.subr.bf16.mxu0 0
    %741 = vmatpush1.bf16.msra.mxu0 0
    %742 = vmatprep.subr.bf16.mxu0 0
    %743 = vmatpush1.bf16.msra.mxu0 0
    %744 = vmatprep.subr.bf16.mxu0 0
    %745 = vmatpush1.bf16.msra.mxu0 0
    %746 = vmatprep.subr.bf16.mxu0 0
    %747 = vmatpush1.bf16.msra.mxu0 0
    %748 = vmatprep.subr.bf16.mxu0 0
    %749 = vmatpush1.bf16.msra.mxu0 0
    %750 = vmatprep.subr.bf16.mxu0 0
    %751 = vmatpush1.bf16.msra.mxu0 0
    %752 = vmatprep.subr.bf16.mxu0 0
    %753 = vmatpush1.bf16.msra.mxu0 0
    %754 = vmatprep.subr.bf16.mxu0 0
    %755 = vmatpush1.bf16.msra.mxu0 0
    %756 = vmatprep.mubr.bf16.mxu0 0
    %757 = vmatmul.mubr.bf16.gmra.mrb[0].mxu0 %v722
    %v758 = vpop.f32.mrb[0].mxu0
    %v759 = vadd.f32 %v713, %v758
    %v760 = vpop.f32.mrb[0].mxu0
    %v761 = vpop.f32.mrb[0].mxu0
    %v762 = vpop.f32.mrb[0].mxu0
    %763 = vdwg.mxu0
    %764 = vmax.xlane.f32.xlu0 %v759
    %v765 = vpop.xlane.xlu0 %764
    %v766 = vsub.f32 %v759, %v765
    %v767 = vmul.f32 %v766, 1.442695
    %v768 = vpow.pop %v767
    %769 = vadd.xlane.f32.xlu0 %v768
    %v770 = vpop.xlane.xlu0 %769
    %v771 = vrcp.pop %v770
    %v772 = vmul.f32 %v768, %v771
    %773 = vst [vmem:[#allocation2] sm:$0xff] %v772
    // Predicated region
    $region30: #{tpu_custom_call.1} parent=1 // pred_check
      _
    $region31: #{tpu_custom_call.1} parent=1 // pred_check_branch
      %775 = sbr.rel (0) target = $region33
    $region32: #{tpu_custom_call.1} parent=1 // pred_region
      %s777 = ssub.s32 128, 128
      %778 = vsyncadd [#allocation3], %s777
      %s780 = sshll.u32 [#allocation2], 4
      %s781 = int_to_ptr.vmem [resolvable:$true] %s780
      %783 = dma.vmem_to_hbm [thread:$0]  %s781, 128, %s7, [#allocation3]
    $region33: #{tpu_custom_call.1} parent=1 // pred_fallthru
      _
    // Predicated region
    $region34: #{tpu_custom_call.1} parent=1 // pred_check
      _
    $region35: #{tpu_custom_call.1} parent=1 // pred_check_branch
      %785 = sbr.rel (0) target = $region37
    $region36: #{tpu_custom_call.1} parent=1 // pred_region
      %786 = dma.done [#allocation3], 128
    $region37: #{tpu_custom_call.1} parent=1 // pred_fallthru
      _
    %787 = vsyncpa [#allocation3], 1

</llo_original>
